<compile_context>
chip_gen: v6e
topology: v6e:2x2x1
jax: 0.10.0
libtpu: 0.0.40
codegen_flags: <defaults>
</compile_context>

<pallas_src>
import jax
import jax.numpy as jnp
from jax import lax
from jax.experimental import pallas as pl
from jax.experimental.pallas import tpu as pltpu

EPS = 1e-7

# Divisions on the serial critical path can use the EUP approximate
# reciprocal (separate bundle slot).  Kept exact here so the 1e-3 check
# against the f32 reference is guaranteed; flip to True in production and
# re-validate.
APPROX_RECIP = False


def _artanh(z):
    z = jnp.clip(z, -1.0 + 1e-6, 1.0 - 1e-6)
    return 0.5 * jnp.log((1.0 + z) / (1.0 - z))


# --------------------------- in-kernel Mobius math ---------------------------

def _mob_matvec(x, M):
    """Mobius matvec (c=1) on the flattened ball.  x: (R, Nin), M: (Nin, Nout)."""
    Mx = jnp.dot(x, M, preferred_element_type=jnp.float32)
    x_n = jnp.sqrt(jnp.sum(x * x, axis=-1, keepdims=True))
    Mx_n = jnp.sqrt(jnp.sum(Mx * Mx, axis=-1, keepdims=True))
    Mx_n_c = jnp.maximum(Mx_n, EPS)
    inv_xn = pl.reciprocal(jnp.maximum(x_n, EPS), approx=APPROX_RECIP)
    inv_Mxn = pl.reciprocal(Mx_n_c, approx=APPROX_RECIP)
    return jnp.tanh(Mx_n_c * inv_xn * _artanh(x_n)) * (Mx * inv_Mxn)


# -------------- phase 1: parallel U ⊗ x_t  and  pool(Ux ⊙ Ux) ---------------

def _ux_kernel(x_ref, u_ref, g_ref, gt_ref, ux_ref, ux2p_ref):
    ux = _mob_matvec(x_ref[...], u_ref[...])
    ux_ref[...] = ux
    # pool(ux*ux): hidden-state independent -> hoisted out of the recurrence.
    s = jnp.dot(ux * ux, g_ref[...], preferred_element_type=jnp.float32)
    ux2p_ref[...] = jnp.dot(s, gt_ref[...], preferred_element_type=jnp.float32)


# ------------------- phase 2: serial recurrence over time -------------------

def _make_recurrent_kernel(time_chunk, batch_tile):
    Tc, Bt = time_chunk, batch_tile

    def kernel(ux_ref, ux2p_ref, w_ref, g_ref, gt_ref, b_ref, b2p_ref,
               o_ref, h_ref):
        @pl.when(pl.program_id(1) == 0)          # new batch block: reset state
        def _():
            h_ref[...] = jnp.zeros_like(h_ref)   # init_rnn_state: zeros

        W = w_ref[...]                            # (Hd, Hd)
        G = g_ref[...]                            # (Hd, H)  ball indicator
        Gt = gt_ref[...]                          # (H, Hd)
        b = b_ref[...]                            # (1, Hd)  bias (flattened)
        b2p = b2p_ref[...]                        # (1, Hd)  pool(b*b), hoisted

        def pool(v):
            # per-ball sum broadcast back over the ball, factorized (no dense P)
            s = jnp.dot(v, G, preferred_element_type=jnp.float32)
            return jnp.dot(s, Gt, preferred_element_type=jnp.float32)

        def step(i, h):
            ux = ux_ref[i]                                         # (Bt, Hd)
            y2 = ux2p_ref[i]                                       # pool(ux*ux)
            wh = _mob_matvec(h, W)                                 # W ⊗ h
            # --- Wh ⊕ Ux : two pooled terms in one stacked pooling pass -----
            p1 = pool(jnp.concatenate([wh * ux, wh * wh], axis=0))
            xy, x2 = p1[:Bt], p1[Bt:]
            num = (1.0 + 2.0 * xy + y2) * wh + (1.0 - x2) * ux
            den = jnp.maximum(1.0 + 2.0 * xy + x2 * y2, EPS)
            s = num * pl.reciprocal(den, approx=APPROX_RECIP)
            # --- (Wh ⊕ Ux) ⊕ b : pool(b*b) is time-invariant (precomputed) --
            p2 = pool(jnp.concatenate([s * b, s * s], axis=0))
            xy_b, s2 = p2[:Bt], p2[Bt:]
            num2 = (1.0 + 2.0 * xy_b + b2p) * s + (1.0 - s2) * b
            den2 = jnp.maximum(1.0 + 2.0 * xy_b + s2 * b2p, EPS)
            h_new = num2 * pl.reciprocal(den2, approx=APPROX_RECIP)
            o_ref[i] = h_new
            return h_new

        h_ref[...] = lax.fori_loop(0, Tc, step, h_ref[...], unroll=True)

    return kernel


# --------------------------------- wrapper ----------------------------------

def hyper_rnn_forward(inputs, w, u, b, d_ball, *, time_chunk=8, batch_tile=8):
    """inputs: (B, T, I, d_ball); w: (H,d,H,d); u: (I,d,H,d); b: (H,d)."""
    B, T, I, d = inputs.shape
    assert d == d_ball
    H = b.shape[0]
    Id, Hd = I * d, H * d
    f32 = jnp.float32

    w_f = w.reshape(Hd, Hd).astype(f32)
    u_f = u.reshape(Id, Hd).astype(f32)
    b_f = b.reshape(1, Hd).astype(f32)

    # Factorized per-ball pooling operator: pool(v) = (v @ G) @ G.T
    grp = jnp.arange(Hd) // d
    G = (grp[:, None] == jnp.arange(H)[None, :]).astype(f32)      # (Hd, H)
    Gt = G.T                                                      # (H, Hd)
    # Hoisted time-invariant bias term: pool(b*b)
    b2 = jnp.sum((b_f * b_f).reshape(H, d), axis=-1)              # (H,)
    b2p = jnp.repeat(b2, d).reshape(1, Hd)                        # (1, Hd)

    # ---- pad batch to a sublane multiple and time to a chunk multiple ------
    Bt = batch_tile
    B_pad = -(-B // Bt) * Bt
    Tc = min(time_chunk, T)
    T_pad = -(-T // Tc) * Tc

    x_seq = jnp.transpose(inputs, (1, 0, 2, 3)).reshape(T, B, Id).astype(f32)
    x_seq = jnp.pad(x_seq, ((0, T_pad - T), (0, B_pad - B), (0, 0)))

    # ---- phase 1 (parallel): U ⊗ x_t and pool((U⊗x)^2) for all rows --------
    M = T_pad * B_pad
    Mt = M if M <= 512 else 256
    M_pad = -(-M // Mt) * Mt
    x_flat = jnp.pad(x_seq.reshape(M, Id), ((0, M_pad - M), (0, 0)))

    ux_flat, ux2p_flat = pl.pallas_call(
        _ux_kernel,
        out_shape=(jax.ShapeDtypeStruct((M_pad, Hd), f32),
                   jax.ShapeDtypeStruct((M_pad, Hd), f32)),
        grid_spec=pltpu.PrefetchScalarGridSpec(
            num_scalar_prefetch=0,
            grid=(M_pad // Mt,),
            in_specs=[pl.BlockSpec((Mt, Id), lambda m: (m, 0)),
                      pl.BlockSpec((Id, Hd), lambda m: (0, 0)),
                      pl.BlockSpec((Hd, H), lambda m: (0, 0)),
                      pl.BlockSpec((H, Hd), lambda m: (0, 0))],
            out_specs=[pl.BlockSpec((Mt, Hd), lambda m: (m, 0)),
                       pl.BlockSpec((Mt, Hd), lambda m: (m, 0))],
        ),
        compiler_params=pltpu.CompilerParams(
            dimension_semantics=("parallel",),
            vmem_limit_bytes=32 * 1024 * 1024),
    )(x_flat, u_f, G, Gt)
    ux_seq = ux_flat[:M].reshape(T_pad, B_pad, Hd)
    ux2p_seq = ux2p_flat[:M].reshape(T_pad, B_pad, Hd)

    # ---- phase 2: serial in time, parallel over batch blocks ---------------
    kernel = _make_recurrent_kernel(Tc, Bt)
    out = pl.pallas_call(
        kernel,
        out_shape=jax.ShapeDtypeStruct((T_pad, B_pad, Hd), f32),
        grid_spec=pltpu.PrefetchScalarGridSpec(
            num_scalar_prefetch=0,
            grid=(B_pad // Bt, T_pad // Tc),
            in_specs=[
                pl.BlockSpec((Tc, Bt, Hd), lambda bb, tc: (tc, bb, 0)),  # Ux
                pl.BlockSpec((Tc, Bt, Hd), lambda bb, tc: (tc, bb, 0)),  # pool(Ux^2)
                pl.BlockSpec((Hd, Hd), lambda bb, tc: (0, 0)),           # W
                pl.BlockSpec((Hd, H), lambda bb, tc: (0, 0)),            # G
                pl.BlockSpec((H, Hd), lambda bb, tc: (0, 0)),            # G.T
                pl.BlockSpec((1, Hd), lambda bb, tc: (0, 0)),            # b
                pl.BlockSpec((1, Hd), lambda bb, tc: (0, 0)),            # pool(b*b)
            ],
            out_specs=pl.BlockSpec((Tc, Bt, Hd), lambda bb, tc: (tc, bb, 0)),
            scratch_shapes=[pltpu.VMEM((Bt, Hd), f32)],                  # hidden
        ),
        compiler_params=pltpu.CompilerParams(
            dimension_semantics=("parallel", "arbitrary"),
            vmem_limit_bytes=32 * 1024 * 1024),
    )(ux_seq, ux2p_seq, w_f, G, Gt, b_f, b2p)

    out = out[:T, :B]
    return jnp.transpose(out, (1, 0, 2)).reshape(B, T, H, d)


# --------------------------- pure-JAX reference ----------------------------

def hyper_rnn_ref(inputs, w, u, b, d_ball):
    B, T, I, d = inputs.shape
    H = b.shape[0]
    Id, Hd = I * d, H * d
    w_f = w.reshape(Hd, Hd).astype(jnp.float32)
    u_f = u.reshape(Id, Hd).astype(jnp.float32)
    b_f = b.reshape(1, Hd).astype(jnp.float32)

    def matvec(x, M):
        Mx = jnp.dot(x, M)
        x_n = jnp.sqrt(jnp.sum(x * x, axis=-1, keepdims=True))
        Mx_n = jnp.sqrt(jnp.sum(Mx * Mx, axis=-1, keepdims=True))
        x_n_c = jnp.maximum(x_n, EPS)
        Mx_n_c = jnp.maximum(Mx_n, EPS)
        return jnp.tanh((Mx_n_c / x_n_c) * _artanh(x_n)) * (Mx / Mx_n_c)

    def mob_add(x, y):
        xr = x.reshape(-1, H, d)
        yr = y.reshape(-1, H, d)
        xy = jnp.sum(xr * yr, -1, keepdims=True)
        x2 = jnp.sum(xr * xr, -1, keepdims=True)
        y2 = jnp.sum(yr * yr, -1, keepdims=True)
        num = (1.0 + 2.0 * xy + y2) * xr + (1.0 - x2) * yr
        den = jnp.maximum(1.0 + 2.0 * xy + x2 * y2, EPS)
        return (num / den).reshape(-1, Hd)

    h = jnp.zeros((B, Hd), jnp.float32)
    outs = []
    for t in range(T):
        x = inputs[:, t].reshape(B, Id).astype(jnp.float32)
        wh = matvec(h, w_f)
        ux = matvec(x, u_f)
        s = mob_add(wh, ux)
        h = mob_add(s, jnp.broadcast_to(b_f, s.shape))
        outs.append(h)
    return jnp.stack(outs, axis=1).reshape(B, T, H, d)


# ----------------------------------- main -----------------------------------

if __name__ == "__main__":
    B, T = 2, 8
    input_size, hidden_size, d_ball = 4, 32, 4

    key = jax.random.PRNGKey(0)
    k_w, k_u, k_x = jax.random.split(key, 3)
    k_init = (1.0 / hidden_size) ** 0.5

    # Deterministic parameter init matching the module's __init__ shapes.
    w = jax.random.uniform(k_w, (hidden_size, d_ball, hidden_size, d_ball),
                           jnp.float32, -k_init, k_init)
    u = jax.random.uniform(k_u, (input_size, d_ball, hidden_size, d_ball),
                           jnp.float32, -k_init, k_init)
    b = jnp.zeros((hidden_size, d_ball), jnp.float32)

    # Inputs: points well inside the Poincare ball.
    raw = jax.random.normal(k_x, (B, T, input_size, d_ball), jnp.float32)
    flat_norm = jnp.sqrt(
        jnp.sum(raw.reshape(B, T, -1) ** 2, axis=-1, keepdims=True))
    inputs = (0.3 * raw.reshape(B, T, -1) / jnp.maximum(flat_norm, EPS)
              ).reshape(B, T, input_size, d_ball)

    # time_chunk=4 -> grid (1, 2): exercises the cross-chunk hidden-state carry.
    out = hyper_rnn_forward(inputs, w, u, b, d_ball, time_chunk=4)
    out = jax.block_until_ready(out)

    ref = hyper_rnn_ref(inputs, w, u, b, d_ball)

    assert out.shape == (B, T, hidden_size, d_ball)
    assert bool(jnp.all(jnp.isfinite(out)))
    assert bool(jnp.allclose(out, ref, atol=1e-3, rtol=1e-3))
    print("KERNEL_OK")
</pallas_src>

<mosaic_0001>
module attributes {stable_mosaic.version = 11 : i64} {
  func.func @_ux_kernel(%arg0: i32, %arg1: memref<64x16xf32, #tpu.memory_space<vmem>>, %arg2: memref<16x128xf32, #tpu.memory_space<vmem>>, %arg3: memref<128x32xf32, #tpu.memory_space<vmem>>, %arg4: memref<32x128xf32, #tpu.memory_space<vmem>>, %arg5: memref<64x128xf32, #tpu.memory_space<vmem>>, %arg6: memref<64x128xf32, #tpu.memory_space<vmem>>) attributes {dimension_semantics = [#tpu.dimension_semantics<parallel>], iteration_bounds = array<i64: 1>, scalar_prefetch = 0 : i64, scratch_operands = 0 : i64, tpu.core_type = #tpu.core_type<tc>, window_params = [{transform_indices = @transform_0, window_bounds = array<i64: 64, 16>}, {pipeline_mode = #tpu.pipeline_mode<synchronous>, transform_indices = @transform_1, window_bounds = array<i64: 16, 128>}, {pipeline_mode = #tpu.pipeline_mode<synchronous>, transform_indices = @transform_2, window_bounds = array<i64: 128, 32>}, {pipeline_mode = #tpu.pipeline_mode<synchronous>, transform_indices = @transform_3, window_bounds = array<i64: 32, 128>}, {transform_indices = @transform_4, window_bounds = array<i64: 64, 128>}, {transform_indices = @transform_5, window_bounds = array<i64: 64, 128>}]} {
    %c0 = arith.constant 0 : index
    %c0_0 = arith.constant 0 : index
    %0 = vector.load %arg1[%c0, %c0_0] : memref<64x16xf32, #tpu.memory_space<vmem>>, vector<64x16xf32>
    %c0_1 = arith.constant 0 : index
    %c0_2 = arith.constant 0 : index
    %1 = vector.load %arg2[%c0_1, %c0_2] : memref<16x128xf32, #tpu.memory_space<vmem>>, vector<16x128xf32>
    %cst = arith.constant dense<0.000000e+00> : vector<64x128xf32>
    %2 = tpu.matmul %0, %1, %cst {dimension_numbers = #tpu.dot_dimension_numbers<[1], [0], [0], [1], [0, 0, 1, 1], [], []>} : vector<64x16xf32>, vector<16x128xf32>, vector<64x128xf32> -> vector<64x128xf32>
    %3 = arith.mulf %0, %0 : vector<64x16xf32>
    %cst_3 = arith.constant dense<0.000000e+00> : vector<64xf32>
    %4 = vector.multi_reduction <add>, %3, %cst_3 [1] : vector<64x16xf32> to vector<64xf32>
    %5 = vector.shape_cast %4 : vector<64xf32> to vector<64x1xf32>
    %6 = math.sqrt %5 : vector<64x1xf32>
    %7 = arith.mulf %2, %2 : vector<64x128xf32>
    %cst_4 = arith.constant dense<0.000000e+00> : vector<64xf32>
    %8 = vector.multi_reduction <add>, %7, %cst_4 [1] : vector<64x128xf32> to vector<64xf32>
    %9 = vector.shape_cast %8 : vector<64xf32> to vector<64x1xf32>
    %10 = math.sqrt %9 : vector<64x1xf32>
    %cst_5 = arith.constant 1.000000e-07 : f32
    %11 = vector.broadcast %cst_5 : f32 to vector<64x1xf32>
    %12 = arith.maximumf %10, %11 : vector<64x1xf32>
    %cst_6 = arith.constant 1.000000e-07 : f32
    %13 = vector.broadcast %cst_6 : f32 to vector<64x1xf32>
    %14 = arith.maximumf %6, %13 : vector<64x1xf32>
    %15 = tpu.reciprocal %14 : vector<64x1xf32> -> vector<64x1xf32>
    %16 = tpu.reciprocal %12 : vector<64x1xf32> -> vector<64x1xf32>
    %17 = arith.mulf %12, %15 : vector<64x1xf32>
    %cst_7 = arith.constant -0.999998986 : f32
    %cst_8 = arith.constant 0.999998986 : f32
    %18 = vector.broadcast %cst_7 : f32 to vector<64x1xf32>
    %19 = arith.maximumf %18, %6 : vector<64x1xf32>
    %20 = vector.broadcast %cst_8 : f32 to vector<64x1xf32>
    %21 = arith.minimumf %20, %19 : vector<64x1xf32>
    %cst_9 = arith.constant 1.000000e+00 : f32
    %22 = vector.broadcast %cst_9 : f32 to vector<64x1xf32>
    %23 = arith.addf %22, %21 : vector<64x1xf32>
    %cst_10 = arith.constant 1.000000e+00 : f32
    %24 = vector.broadcast %cst_10 : f32 to vector<64x1xf32>
    %25 = arith.subf %24, %21 : vector<64x1xf32>
    %26 = arith.divf %23, %25 : vector<64x1xf32>
    %27 = math.log %26 : vector<64x1xf32>
    %cst_11 = arith.constant 5.000000e-01 : f32
    %28 = vector.broadcast %cst_11 : f32 to vector<64x1xf32>
    %29 = arith.mulf %28, %27 : vector<64x1xf32>
    %30 = arith.mulf %17, %29 : vector<64x1xf32>
    %31 = math.tanh %30 : vector<64x1xf32>
    %32 = vector.broadcast %16 : vector<64x1xf32> to vector<64x128xf32>
    %33 = arith.mulf %2, %32 : vector<64x128xf32>
    %34 = vector.broadcast %31 : vector<64x1xf32> to vector<64x128xf32>
    %35 = arith.mulf %34, %33 : vector<64x128xf32>
    %c0_12 = arith.constant 0 : index
    %c0_13 = arith.constant 0 : index
    %36 = vector.load %arg5[%c0_12, %c0_13] : memref<64x128xf32, #tpu.memory_space<vmem>>, vector<64x128xf32>
    tpu.vector_store %arg5[%c0_12, %c0_13], %35 {strides = array<i32>} : memref<64x128xf32, #tpu.memory_space<vmem>>, vector<64x128xf32>,
    %37 = arith.mulf %35, %35 : vector<64x128xf32>
    %c0_14 = arith.constant 0 : index
    %c0_15 = arith.constant 0 : index
    %38 = vector.load %arg3[%c0_14, %c0_15] : memref<128x32xf32, #tpu.memory_space<vmem>>, vector<128x32xf32>
    %cst_16 = arith.constant dense<0.000000e+00> : vector<64x32xf32>
    %39 = tpu.matmul %37, %38, %cst_16 {dimension_numbers = #tpu.dot_dimension_numbers<[1], [0], [0], [1], [0, 0, 1, 1], [], []>} : vector<64x128xf32>, vector<128x32xf32>, vector<64x32xf32> -> vector<64x32xf32>
    %c0_17 = arith.constant 0 : index
    %c0_18 = arith.constant 0 : index
    %40 = vector.load %arg4[%c0_17, %c0_18] : memref<32x128xf32, #tpu.memory_space<vmem>>, vector<32x128xf32>
    %cst_19 = arith.constant dense<0.000000e+00> : vector<64x128xf32>
    %41 = tpu.matmul %39, %40, %cst_19 {dimension_numbers = #tpu.dot_dimension_numbers<[1], [0], [0], [1], [0, 0, 1, 1], [], []>} : vector<64x32xf32>, vector<32x128xf32>, vector<64x128xf32> -> vector<64x128xf32>
    %c0_20 = arith.constant 0 : index
    %c0_21 = arith.constant 0 : index
    %42 = vector.load %arg6[%c0_20, %c0_21] : memref<64x128xf32, #tpu.memory_space<vmem>>, vector<64x128xf32>
    tpu.vector_store %arg6[%c0_20, %c0_21], %41 {strides = array<i32>} : memref<64x128xf32, #tpu.memory_space<vmem>>, vector<64x128xf32>,
    return
  }
  func.func @transform_0(%arg0: i32) -> (i32, i32) {
    %c0_i32 = arith.constant 0 : i32
    %c0_i32_0 = arith.constant 0 : i32
    return %arg0, %c0_i32 : i32, i32
  }
  func.func @transform_1(%arg0: i32) -> (i32, i32) {
    %c0_i32 = arith.constant 0 : i32
    %c0_i32_0 = arith.constant 0 : i32
    %c0_i32_1 = arith.constant 0 : i32
    return %c0_i32, %c0_i32_0 : i32, i32
  }
  func.func @transform_2(%arg0: i32) -> (i32, i32) {
    %c0_i32 = arith.constant 0 : i32
    %c0_i32_0 = arith.constant 0 : i32
    %c0_i32_1 = arith.constant 0 : i32
    return %c0_i32, %c0_i32_0 : i32, i32
  }
  func.func @transform_3(%arg0: i32) -> (i32, i32) {
    %c0_i32 = arith.constant 0 : i32
    %c0_i32_0 = arith.constant 0 : i32
    %c0_i32_1 = arith.constant 0 : i32
    return %c0_i32, %c0_i32_0 : i32, i32
  }
  func.func @transform_4(%arg0: i32) -> (i32, i32) {
    %c0_i32 = arith.constant 0 : i32
    %c0_i32_0 = arith.constant 0 : i32
    return %arg0, %c0_i32 : i32, i32
  }
  func.func @transform_5(%arg0: i32) -> (i32, i32) {
    %c0_i32 = arith.constant 0 : i32
    %c0_i32_0 = arith.constant 0 : i32
    return %arg0, %c0_i32 : i32, i32
  }
}

</mosaic_0001>

<llo_original>
// kernel: tpu_custom_call.1
$region0: #{tpu_custom_call.1}
  #allocation0 [shape = 'u32[]', space=smem, size = 0x4, offset = 0x4, fixed_abs, tag = 'smem constant byte address 0x4 - core index']
  #allocation1 [shape = 'u32[144,128]{1,0:T(1,128)}', space=vmem, size = 0x12000, scoped, tag = 'internal scratch']
  %s0 = inlined_call_operand.vmem [shape: f32[64,16], index: 0, kind: input, shape index: {}]
  %s1 = inlined_call_operand.vmem [shape: f32[16,128], index: 1, kind: input, shape index: {}]
  %s2 = inlined_call_operand.vmem [shape: f32[128,32], index: 2, kind: input, shape index: {}]
  %s3 = inlined_call_operand.vmem [shape: f32[32,128], index: 3, kind: input, shape index: {}]
  %s4 = inlined_call_operand.hbm [shape: f32[64,128], index: 4, kind: output, shape index: {0}]
  %s5 = inlined_call_operand.hbm [shape: f32[64,128], index: 5, kind: output, shape index: {1}]
  %6 = xla_tuple %s4, %s5
  %s7 = sld [smem:[#allocation0]]
  $region34: #{tpu_custom_call.1} parent=0
    _
  %s9 = ssub.s32 1, %s7
  %s10 = scalar_select 0, %s9, %s7
  $region1: #{tpu_custom_call.1} parent=0
    #allocation2 [shape = 'u8[32768]{0}', space=vmem, size = 0x8000, scoped, tag = 'output window, operand 0, single buffered']
    #allocation3 [shape = 's32[1]{0}', space=sflag, size = 0x4, scoped, tag = 'scoped memory for tpu_custom_call.1']
    #allocation4 [shape = 'u8[32768]{0}', space=vmem, size = 0x8000, scoped, tag = 'output window, operand 1, single buffered']
    #allocation5 [shape = 's32[1]{0}', space=sflag, size = 0x4, scoped, tag = 'scoped memory for tpu_custom_call.1']
    %11 = vsyncpa [#allocation3], 0
    %12 = vsyncpa [#allocation5], 0
    // Predicated region
    $region2: #{tpu_custom_call.1} parent=1 // pred_check
      _
    $region3: #{tpu_custom_call.1} parent=1 // pred_check_branch
      %14 = sbr.rel (0) target = $region5
    $region4: #{tpu_custom_call.1} parent=1 // pred_region
      _
    $region5: #{tpu_custom_call.1} parent=1 // pred_fallthru
      _
    // Predicated region
    $region6: #{tpu_custom_call.1} parent=1 // pred_check
      _
    $region7: #{tpu_custom_call.1} parent=1 // pred_check_branch
      %16 = sbr.rel (0) target = $region9
    $region8: #{tpu_custom_call.1} parent=1 // pred_region
      _
    $region9: #{tpu_custom_call.1} parent=1 // pred_fallthru
      _
    // Predicated region
    $region10: #{tpu_custom_call.1} parent=1 // pred_check
      _
    $region11: #{tpu_custom_call.1} parent=1 // pred_check_branch
      %18 = sbr.rel (0) target = $region13
    $region12: #{tpu_custom_call.1} parent=1 // pred_region
      _
    $region13: #{tpu_custom_call.1} parent=1 // pred_fallthru
      _
    // Predicated region
    $region14: #{tpu_custom_call.1} parent=1 // pred_check
      _
    $region15: #{tpu_custom_call.1} parent=1 // pred_check_branch
      %20 = sbr.rel (0) target = $region17
    $region16: #{tpu_custom_call.1} parent=1 // pred_region
      _
    $region17: #{tpu_custom_call.1} parent=1 // pred_fallthru
      _
    %v21 = vld [vmem:[%s0] sm:$0xff]
    %v22 = vld [vmem:[%s0 + $0x8] sm:$0xff]
    %v23 = vld [vmem:[%s0 + $0x10] sm:$0xff]
    %v24 = vld [vmem:[%s0 + $0x18] sm:$0xff]
    %v25 = vld [vmem:[%s0 + $0x20] sm:$0xff]
    %v26 = vld [vmem:[%s0 + $0x28] sm:$0xff]
    %v27 = vld [vmem:[%s0 + $0x30] sm:$0xff]
    %v28 = vld [vmem:[%s0 + $0x38] sm:$0xff]
    %v29 = vld [vmem:[%s1] sm:$0xff]
    %v30 = vld [vmem:[%s1 + $0x8] sm:$0xff]
    %vm31 = vcmask 130048
    %v33 = vsel %vm31, %v21, 0
    %v36 = vsel %vm31, %v22, 0
    %v39 = vsel %vm31, %v23, 0
    %v42 = vsel %vm31, %v24, 0
    %v45 = vsel %vm31, %v25, 0
    %v48 = vsel %vm31, %v26, 0
    %v51 = vsel %vm31, %v27, 0
    %v54 = vsel %vm31, %v28, 0
    %56 = vmatprep.subr.mxu0 0.0
    %57 = vmatpush1.msra.mxu0 0.0
    %58 = vmatprep.subr.mxu0 0.0
    %59 = vmatpush1.msra.mxu0 0.0
    %60 = vmatprep.subr.mxu0 0.0
    %61 = vmatpush1.msra.mxu0 0.0
    %62 = vmatprep.subr.mxu0 0.0
    %63 = vmatpush1.msra.mxu0 0.0
    %64 = vmatprep.subr.mxu0 0.0
    %65 = vmatpush1.msra.mxu0 0.0
    %66 = vmatprep.subr.mxu0 0.0
    %67 = vmatpush1.msra.mxu0 0.0
    %68 = vmatprep.subr.mxu0 0.0
    %69 = vmatpush1.msra.mxu0 0.0
    %70 = vmatprep.subr.mxu0 0.0
    %71 = vmatpush1.msra.mxu0 0.0
    %72 = vmatprep.subr.mxu0 0.0
    %73 = vmatpush1.msra.mxu0 0.0
    %74 = vmatprep.subr.mxu0 0.0
    %75 = vmatpush1.msra.mxu0 0.0
    %76 = vmatprep.subr.mxu0 0.0
    %77 = vmatpush1.msra.mxu0 0.0
    %78 = vmatprep.subr.mxu0 0.0
    %79 = vmatpush1.msra.mxu0 0.0
    %80 = vmatprep.subr.mxu0 0.0
    %81 = vmatpush1.msra.mxu0 0.0
    %82 = vmatprep.subr.mxu0 0.0
    %83 = vmatpush1.msra.mxu0 0.0
    %84 = vmatprep.subr.mxu0 0.0
    %85 = vmatpush1.msra.mxu0 %v30
    %86 = vmatprep.subr.mxu0 0.0
    %87 = vmatpush1.msra.mxu0 %v29
    %88 = vmatprep.subr.mxu0 0.0
    %89 = vmatpush2.msra.mxu0 0.0
    %90 = vmatprep.subr.mxu0 0.0
    %91 = vmatpush2.msra.mxu0 0.0
    %92 = vmatprep.subr.mxu0 0.0
    %93 = vmatpush2.msra.mxu0 0.0
    %94 = vmatprep.subr.mxu0 0.0
    %95 = vmatpush2.msra.mxu0 0.0
    %96 = vmatprep.subr.mxu0 0.0
    %97 = vmatpush2.msra.mxu0 0.0
    %98 = vmatprep.subr.mxu0 0.0
    %99 = vmatpush2.msra.mxu0 0.0
    %100 = vmatprep.subr.mxu0 0.0
    %101 = vmatpush2.msra.mxu0 0.0
    %102 = vmatprep.subr.mxu0 0.0
    %103 = vmatpush2.msra.mxu0 0.0
    %104 = vmatprep.subr.mxu0 0.0
    %105 = vmatpush2.msra.mxu0 0.0
    %106 = vmatprep.subr.mxu0 0.0
    %107 = vmatpush2.msra.mxu0 0.0
    %108 = vmatprep.subr.mxu0 0.0
    %109 = vmatpush2.msra.mxu0 0.0
    %110 = vmatprep.subr.mxu0 0.0
    %111 = vmatpush2.msra.mxu0 0.0
    %112 = vmatprep.subr.mxu0 0.0
    %113 = vmatpush2.msra.mxu0 0.0
    %114 = vmatprep.subr.mxu0 0.0
    %115 = vmatpush2.msra.mxu0 0.0
    %116 = vmatprep.subr.mxu0 0.0
    %117 = vmatpush2.msra.mxu0 0.0
    %118 = vmatprep.subr.mxu0 0.0
    %119 = vmatpush2.msra.mxu0 0.0
    %120 = vmatprep.mubr.f32.mxu0 0.0
    %121 = vmatmul.mubr.f32.gmra.mxu0 %v33
    %v122 = vpop.f32.mrf.mxu0
    %v123 = vadd.f32 0.0, %v122
    %v124 = vpop.f32.mrf.mxu0
    %125 = vmatprep.mubr.f32.mxu0 0.0
    %126 = vmatmul.mubr.f32.gmra.mxu0 %v36
    %v127 = vpop.f32.mrf.mxu0
    %v128 = vadd.f32 0.0, %v127
    %v129 = vpop.f32.mrf.mxu0
    %130 = vmatprep.mubr.f32.mxu0 0.0
    %131 = vmatmul.mubr.f32.gmra.mxu0 %v39
    %v132 = vpop.f32.mrf.mxu0
    %v133 = vadd.f32 0.0, %v132
    %v134 = vpop.f32.mrf.mxu0
    %135 = vmatprep.mubr.f32.mxu0 0.0
    %136 = vmatmul.mubr.f32.gmra.mxu0 %v42
    %v137 = vpop.f32.mrf.mxu0
    %v138 = vadd.f32 0.0, %v137
    %v139 = vpop.f32.mrf.mxu0
    %140 = vmatprep.mubr.f32.mxu0 0.0
    %141 = vmatmul.mubr.f32.gmra.mxu0 %v45
    %v142 = vpop.f32.mrf.mxu0
    %v143 = vadd.f32 0.0, %v142
    %v144 = vpop.f32.mrf.mxu0
    %145 = vmatprep.mubr.f32.mxu0 0.0
    %146 = vmatmul.mubr.f32.gmra.mxu0 %v48
    %v147 = vpop.f32.mrf.mxu0
    %v148 = vadd.f32 0.0, %v147
    %v149 = vpop.f32.mrf.mxu0
    %150 = vmatprep.mubr.f32.mxu0 0.0
    %151 = vmatmul.mubr.f32.gmra.mxu0 %v51
    %v152 = vpop.f32.mrf.mxu0
    %v153 = vadd.f32 0.0, %v152
    %v154 = vpop.f32.mrf.mxu0
    %155 = vmatprep.mubr.f32.mxu0 0.0
    %156 = vmatmul.mubr.f32.gmra.mxu0 %v54
    %v157 = vpop.f32.mrf.mxu0
    %v158 = vadd.f32 0.0, %v157
    %v159 = vpop.f32.mrf.mxu0
    %160 = vdwg.mxu0
    %v161 = vmul.f32 %v21, %v21
    %v162 = vmul.f32 %v22, %v22
    %v163 = vmul.f32 %v23, %v23
    %v164 = vmul.f32 %v24, %v24
    %v165 = vmul.f32 %v25, %v25
    %v166 = vmul.f32 %v26, %v26
    %v167 = vmul.f32 %v27, %v27
    %v168 = vmul.f32 %v28, %v28
    %v169 = vsel %vm31, %v161, 0.0
    %170 = vadd.xlane.f32.xlu0 %v169
    %v171 = vpop.xlane.xlu0 %170
    %v172 = vsel %vm31, %v162, 0.0
    %173 = vadd.xlane.f32.xlu0 %v172
    %v174 = vpop.xlane.xlu0 %173
    %v175 = vsel %vm31, %v163, 0.0
    %176 = vadd.xlane.f32.xlu0 %v175
    %v177 = vpop.xlane.xlu0 %176
    %v178 = vsel %vm31, %v164, 0.0
    %179 = vadd.xlane.f32.xlu0 %v178
    %v180 = vpop.xlane.xlu0 %179
    %v181 = vsel %vm31, %v165, 0.0
    %182 = vadd.xlane.f32.xlu0 %v181
    %v183 = vpop.xlane.xlu0 %182
    %v184 = vsel %vm31, %v166, 0.0
    %185 = vadd.xlane.f32.xlu0 %v184
    %v186 = vpop.xlane.xlu0 %185
    %v187 = vsel %vm31, %v167, 0.0
    %188 = vadd.xlane.f32.xlu0 %v187
    %v189 = vpop.xlane.xlu0 %188
    %v190 = vsel %vm31, %v168, 0.0
    %191 = vadd.xlane.f32.xlu0 %v190
    %v192 = vpop.xlane.xlu0 %191
    %v193 = vrsqrt.pop %v171
    %v194 = vmul.f32 %v171, %v193
    %vm195 = vcmp.eq.f32.partialorder %v171, inf
    %v196 = vsel %vm195, %v171, %v194
    %vm197 = vcmp.eq.f32.partialorder %v171, 0.0
    %v198 = vand.u32 %v171, 2147483648
    %v199 = vsel %vm197, %v198, %v196
    %v200 = vrsqrt.pop %v174
    %v201 = vmul.f32 %v174, %v200
    %vm202 = vcmp.eq.f32.partialorder %v174, inf
    %v203 = vsel %vm202, %v174, %v201
    %vm204 = vcmp.eq.f32.partialorder %v174, 0.0
    %v205 = vand.u32 %v174, 2147483648
    %v206 = vsel %vm204, %v205, %v203
    %v207 = vrsqrt.pop %v177
    %v208 = vmul.f32 %v177, %v207
    %vm209 = vcmp.eq.f32.partialorder %v177, inf
    %v210 = vsel %vm209, %v177, %v208
    %vm211 = vcmp.eq.f32.partialorder %v177, 0.0
    %v212 = vand.u32 %v177, 2147483648
    %v213 = vsel %vm211, %v212, %v210
    %v214 = vrsqrt.pop %v180
    %v215 = vmul.f32 %v180, %v214
    %vm216 = vcmp.eq.f32.partialorder %v180, inf
    %v217 = vsel %vm216, %v180, %v215
    %vm218 = vcmp.eq.f32.partialorder %v180, 0.0
    %v219 = vand.u32 %v180, 2147483648
    %v220 = vsel %vm218, %v219, %v217
    %v221 = vrsqrt.pop %v183
    %v222 = vmul.f32 %v183, %v221
    %vm223 = vcmp.eq.f32.partialorder %v183, inf
    %v224 = vsel %vm223, %v183, %v222
    %vm225 = vcmp.eq.f32.partialorder %v183, 0.0
    %v226 = vand.u32 %v183, 2147483648
    %v227 = vsel %vm225, %v226, %v224
    %v228 = vrsqrt.pop %v186
    %v229 = vmul.f32 %v186, %v228
    %vm230 = vcmp.eq.f32.partialorder %v186, inf
    %v231 = vsel %vm230, %v186, %v229
    %vm232 = vcmp.eq.f32.partialorder %v186, 0.0
    %v233 = vand.u32 %v186, 2147483648
    %v234 = vsel %vm232, %v233, %v231
    %v235 = vrsqrt.pop %v189
    %v236 = vmul.f32 %v189, %v235
    %vm237 = vcmp.eq.f32.partialorder %v189, inf
    %v238 = vsel %vm237, %v189, %v236
    %vm239 = vcmp.eq.f32.partialorder %v189, 0.0
    %v240 = vand.u32 %v189, 2147483648
    %v241 = vsel %vm239, %v240, %v238
    %v242 = vrsqrt.pop %v192
    %v243 = vmul.f32 %v192, %v242
    %vm244 = vcmp.eq.f32.partialorder %v192, inf
    %v245 = vsel %vm244, %v192, %v243
    %vm246 = vcmp.eq.f32.partialorder %v192, 0.0
    %v247 = vand.u32 %v192, 2147483648
    %v248 = vsel %vm246, %v247, %v245
    %v249 = vmul.f32 %v123, %v123
    %v250 = vmul.f32 %v128, %v128
    %v251 = vmul.f32 %v133, %v133
    %v252 = vmul.f32 %v138, %v138
    %v253 = vmul.f32 %v143, %v143
    %v254 = vmul.f32 %v148, %v148
    %v255 = vmul.f32 %v153, %v153
    %v256 = vmul.f32 %v158, %v158
    %257 = vadd.xlane.f32.xlu0 %v249
    %v258 = vpop.xlane.xlu0 %257
    %259 = vadd.xlane.f32.xlu0 %v250
    %v260 = vpop.xlane.xlu0 %259
    %261 = vadd.xlane.f32.xlu0 %v251
    %v262 = vpop.xlane.xlu0 %261
    %263 = vadd.xlane.f32.xlu0 %v252
    %v264 = vpop.xlane.xlu0 %263
    %265 = vadd.xlane.f32.xlu0 %v253
    %v266 = vpop.xlane.xlu0 %265
    %267 = vadd.xlane.f32.xlu0 %v254
    %v268 = vpop.xlane.xlu0 %267
    %269 = vadd.xlane.f32.xlu0 %v255
    %v270 = vpop.xlane.xlu0 %269
    %271 = vadd.xlane.f32.xlu0 %v256
    %v272 = vpop.xlane.xlu0 %271
    %v273 = vrsqrt.pop %v258
    %v274 = vmul.f32 %v258, %v273
    %vm275 = vcmp.eq.f32.partialorder %v258, inf
    %v276 = vsel %vm275, %v258, %v274
    %vm277 = vcmp.eq.f32.partialorder %v258, 0.0
    %v278 = vand.u32 %v258, 2147483648
    %v279 = vsel %vm277, %v278, %v276
    %v280 = vrsqrt.pop %v260
    %v281 = vmul.f32 %v260, %v280
    %vm282 = vcmp.eq.f32.partialorder %v260, inf
    %v283 = vsel %vm282, %v260, %v281
    %vm284 = vcmp.eq.f32.partialorder %v260, 0.0
    %v285 = vand.u32 %v260, 2147483648
    %v286 = vsel %vm284, %v285, %v283
    %v287 = vrsqrt.pop %v262
    %v288 = vmul.f32 %v262, %v287
    %vm289 = vcmp.eq.f32.partialorder %v262, inf
    %v290 = vsel %vm289, %v262, %v288
    %vm291 = vcmp.eq.f32.partialorder %v262, 0.0
    %v292 = vand.u32 %v262, 2147483648
    %v293 = vsel %vm291, %v292, %v290
    %v294 = vrsqrt.pop %v264
    %v295 = vmul.f32 %v264, %v294
    %vm296 = vcmp.eq.f32.partialorder %v264, inf
    %v297 = vsel %vm296, %v264, %v295
    %vm298 = vcmp.eq.f32.partialorder %v264, 0.0
    %v299 = vand.u32 %v264, 2147483648
    %v300 = vsel %vm298, %v299, %v297
    %v301 = vrsqrt.pop %v266
    %v302 = vmul.f32 %v266, %v301
    %vm303 = vcmp.eq.f32.partialorder %v266, inf
    %v304 = vsel %vm303, %v266, %v302
    %vm305 = vcmp.eq.f32.partialorder %v266, 0.0
    %v306 = vand.u32 %v266, 2147483648
    %v307 = vsel %vm305, %v306, %v304
    %v308 = vrsqrt.pop %v268
    %v309 = vmul.f32 %v268, %v308
    %vm310 = vcmp.eq.f32.partialorder %v268, inf
    %v311 = vsel %vm310, %v268, %v309
    %vm312 = vcmp.eq.f32.partialorder %v268, 0.0
    %v313 = vand.u32 %v268, 2147483648
    %v314 = vsel %vm312, %v313, %v311
    %v315 = vrsqrt.pop %v270
    %v316 = vmul.f32 %v270, %v315
    %vm317 = vcmp.eq.f32.partialorder %v270, inf
    %v318 = vsel %vm317, %v270, %v316
    %vm319 = vcmp.eq.f32.partialorder %v270, 0.0
    %v320 = vand.u32 %v270, 2147483648
    %v321 = vsel %vm319, %v320, %v318
    %v322 = vrsqrt.pop %v272
    %v323 = vmul.f32 %v272, %v322
    %vm324 = vcmp.eq.f32.partialorder %v272, inf
    %v325 = vsel %vm324, %v272, %v323
    %vm326 = vcmp.eq.f32.partialorder %v272, 0.0
    %v327 = vand.u32 %v272, 2147483648
    %v328 = vsel %vm326, %v327, %v325
    %v329 = vmax.f32 %v279, 1e-07
    %v330 = vmax.f32 %v286, 1e-07
    %v331 = vmax.f32 %v293, 1e-07
    %v332 = vmax.f32 %v300, 1e-07
    %v333 = vmax.f32 %v307, 1e-07
    %v334 = vmax.f32 %v314, 1e-07
    %v335 = vmax.f32 %v321, 1e-07
    %v336 = vmax.f32 %v328, 1e-07
    %v337 = vmax.f32 %v199, 1e-07
    %v338 = vmax.f32 %v206, 1e-07
    %v339 = vmax.f32 %v213, 1e-07
    %v340 = vmax.f32 %v220, 1e-07
    %v341 = vmax.f32 %v227, 1e-07
    %v342 = vmax.f32 %v234, 1e-07
    %v343 = vmax.f32 %v241, 1e-07
    %v344 = vmax.f32 %v248, 1e-07
    %v345 = vrcp.pop %v337
    %v346 = vrcp.pop %v338
    %v347 = vrcp.pop %v339
    %v348 = vrcp.pop %v340
    %v349 = vrcp.pop %v341
    %v350 = vrcp.pop %v342
    %v351 = vrcp.pop %v343
    %v352 = vrcp.pop %v344
    %v353 = vrcp.pop %v329
    %v354 = vrcp.pop %v330
    %v355 = vrcp.pop %v331
    %v356 = vrcp.pop %v332
    %v357 = vrcp.pop %v333
    %v358 = vrcp.pop %v334
    %v359 = vrcp.pop %v335
    %v360 = vrcp.pop %v336
    %v361 = vmul.f32 %v329, %v345
    %v362 = vmul.f32 %v330, %v346
    %v363 = vmul.f32 %v331, %v347
    %v364 = vmul.f32 %v332, %v348
    %v365 = vmul.f32 %v333, %v349
    %v366 = vmul.f32 %v334, %v350
    %v367 = vmul.f32 %v335, %v351
    %v368 = vmul.f32 %v336, %v352
    %v369 = vmax.f32 %v199, -0.999999
    %v370 = vmax.f32 %v206, -0.999999
    %v371 = vmax.f32 %v213, -0.999999
    %v372 = vmax.f32 %v220, -0.999999
    %v373 = vmax.f32 %v227, -0.999999
    %v374 = vmax.f32 %v234, -0.999999
    %v375 = vmax.f32 %v241, -0.999999
    %v376 = vmax.f32 %v248, -0.999999
    %v377 = vmin.f32 %v369, 0.999999
    %v378 = vmin.f32 %v370, 0.999999
    %v379 = vmin.f32 %v371, 0.999999
    %v380 = vmin.f32 %v372, 0.999999
    %v381 = vmin.f32 %v373, 0.999999
    %v382 = vmin.f32 %v374, 0.999999
    %v383 = vmin.f32 %v375, 0.999999
    %v384 = vmin.f32 %v376, 0.999999
    %v385 = vadd.f32 %v377, 1.0
    %v386 = vadd.f32 %v378, 1.0
    %v387 = vadd.f32 %v379, 1.0
    %v388 = vadd.f32 %v380, 1.0
    %v389 = vadd.f32 %v381, 1.0
    %v390 = vadd.f32 %v382, 1.0
    %v391 = vadd.f32 %v383, 1.0
    %v392 = vadd.f32 %v384, 1.0
    %v393 = vsub.f32 1.0, %v377
    %v394 = vsub.f32 1.0, %v378
    %v395 = vsub.f32 1.0, %v379
    %v396 = vsub.f32 1.0, %v380
    %v397 = vsub.f32 1.0, %v381
    %v398 = vsub.f32 1.0, %v382
    %v399 = vsub.f32 1.0, %v383
    %v400 = vsub.f32 1.0, %v384
    %v401 = vrcp.pop %v393
    %v402 = vmul.f32 %v385, %v401
    %v403 = vrcp.pop %v394
    %v404 = vmul.f32 %v386, %v403
    %v405 = vrcp.pop %v395
    %v406 = vmul.f32 %v387, %v405
    %v407 = vrcp.pop %v396
    %v408 = vmul.f32 %v388, %v407
    %v409 = vrcp.pop %v397
    %v410 = vmul.f32 %v389, %v409
    %v411 = vrcp.pop %v398
    %v412 = vmul.f32 %v390, %v411
    %v413 = vrcp.pop %v399
    %v414 = vmul.f32 %v391, %v413
    %v415 = vrcp.pop %v400
    %v416 = vmul.f32 %v392, %v415
    %v417 = vlog2.pop %v402
    %v418 = vmul.f32 %v417, 0.6931472
    %v419 = vlog2.pop %v404
    %v420 = vmul.f32 %v419, 0.6931472
    %v421 = vlog2.pop %v406
    %v422 = vmul.f32 %v421, 0.6931472
    %v423 = vlog2.pop %v408
    %v424 = vmul.f32 %v423, 0.6931472
    %v425 = vlog2.pop %v410
    %v426 = vmul.f32 %v425, 0.6931472
    %v427 = vlog2.pop %v412
    %v428 = vmul.f32 %v427, 0.6931472
    %v429 = vlog2.pop %v414
    %v430 = vmul.f32 %v429, 0.6931472
    %v431 = vlog2.pop %v416
    %v432 = vmul.f32 %v431, 0.6931472
    %v433 = vmul.f32 %v418, 0.5
    %v434 = vmul.f32 %v420, 0.5
    %v435 = vmul.f32 %v422, 0.5
    %v436 = vmul.f32 %v424, 0.5
    %v437 = vmul.f32 %v426, 0.5
    %v438 = vmul.f32 %v428, 0.5
    %v439 = vmul.f32 %v430, 0.5
    %v440 = vmul.f32 %v432, 0.5
    %v441 = vmul.f32 %v361, %v433
    %v442 = vmul.f32 %v362, %v434
    %v443 = vmul.f32 %v363, %v435
    %v444 = vmul.f32 %v364, %v436
    %v445 = vmul.f32 %v365, %v437
    %v446 = vmul.f32 %v366, %v438
    %v447 = vmul.f32 %v367, %v439
    %v448 = vmul.f32 %v368, %v440
    %v449 = vtanh.pop %v441
    %v450 = vtanh.pop %v442
    %v451 = vtanh.pop %v443
    %v452 = vtanh.pop %v444
    %v453 = vtanh.pop %v445
    %v454 = vtanh.pop %v446
    %v455 = vtanh.pop %v447
    %v456 = vtanh.pop %v448
    %v457 = vmul.f32 %v123, %v353
    %v458 = vmul.f32 %v128, %v354
    %v459 = vmul.f32 %v133, %v355
    %v460 = vmul.f32 %v138, %v356
    %v461 = vmul.f32 %v143, %v357
    %v462 = vmul.f32 %v148, %v358
    %v463 = vmul.f32 %v153, %v359
    %v464 = vmul.f32 %v158, %v360
    %v465 = vmul.f32 %v449, %v457
    %v466 = vmul.f32 %v450, %v458
    %v467 = vmul.f32 %v451, %v459
    %v468 = vmul.f32 %v452, %v460
    %v469 = vmul.f32 %v453, %v461
    %v470 = vmul.f32 %v454, %v462
    %v471 = vmul.f32 %v455, %v463
    %v472 = vmul.f32 %v456, %v464
    %473 = vst [vmem:[#allocation2] sm:$0xff] %v465
    %474 = vst [vmem:[#allocation2 + $0x8] sm:$0xff] %v466
    %475 = vst [vmem:[#allocation2 + $0x10] sm:$0xff] %v467
    %476 = vst [vmem:[#allocation2 + $0x18] sm:$0xff] %v468
    %477 = vst [vmem:[#allocation2 + $0x20] sm:$0xff] %v469
    %478 = vst [vmem:[#allocation2 + $0x28] sm:$0xff] %v470
    %479 = vst [vmem:[#allocation2 + $0x30] sm:$0xff] %v471
    %480 = vst [vmem:[#allocation2 + $0x38] sm:$0xff] %v472
    %v481 = vmul.f32 %v465, %v465
    %v482 = vmul.f32 %v466, %v466
    %v483 = vmul.f32 %v467, %v467
    %v484 = vmul.f32 %v468, %v468
    %v485 = vmul.f32 %v469, %v469
    %v486 = vmul.f32 %v470, %v470
    %v487 = vmul.f32 %v471, %v471
    %v488 = vmul.f32 %v472, %v472
    %v489 = vld [vmem:[%s2] sm:$0xff]
    %v490 = vld [vmem:[%s2 + $0x8] sm:$0xff]
    %v491 = vld [vmem:[%s2 + $0x10] sm:$0xff]
    %v492 = vld [vmem:[%s2 + $0x18] sm:$0xff]
    %v493 = vld [vmem:[%s2 + $0x20] sm:$0xff]
    %v494 = vld [vmem:[%s2 + $0x28] sm:$0xff]
    %v495 = vld [vmem:[%s2 + $0x30] sm:$0xff]
    %v496 = vld [vmem:[%s2 + $0x38] sm:$0xff]
    %v497 = vld [vmem:[%s2 + $0x40] sm:$0xff]
    %v498 = vld [vmem:[%s2 + $0x48] sm:$0xff]
    %v499 = vld [vmem:[%s2 + $0x50] sm:$0xff]
    %v500 = vld [vmem:[%s2 + $0x58] sm:$0xff]
    %v501 = vld [vmem:[%s2 + $0x60] sm:$0xff]
    %v502 = vld [vmem:[%s2 + $0x68] sm:$0xff]
    %v503 = vld [vmem:[%s2 + $0x70] sm:$0xff]
    %v504 = vld [vmem:[%s2 + $0x78] sm:$0xff]
    %505 = vmatprep.subr.mxu0 0.0
    %506 = vmatpush1.msra.mxu0 %v504
    %507 = vmatprep.subr.mxu0 0.0
    %508 = vmatpush1.msra.mxu0 %v503
    %509 = vmatprep.subr.mxu0 0.0
    %510 = vmatpush1.msra.mxu0 %v502
    %511 = vmatprep.subr.mxu0 0.0
    %512 = vmatpush1.msra.mxu0 %v501
    %513 = vmatprep.subr.mxu0 0.0
    %514 = vmatpush1.msra.mxu0 %v500
    %515 = vmatprep.subr.mxu0 0.0
    %516 = vmatpush1.msra.mxu0 %v499
    %517 = vmatprep.subr.mxu0 0.0
    %518 = vmatpush1.msra.mxu0 %v498
    %519 = vmatprep.subr.mxu0 0.0
    %520 = vmatpush1.msra.mxu0 %v497
    %521 = vmatprep.subr.mxu0 0.0
    %522 = vmatpush1.msra.mxu0 %v496
    %523 = vmatprep.subr.mxu0 0.0
    %524 = vmatpush1.msra.mxu0 %v495
    %525 = vmatprep.subr.mxu0 0.0
    %526 = vmatpush1.msra.mxu0 %v494
    %527 = vmatprep.subr.mxu0 0.0
    %528 = vmatpush1.msra.mxu0 %v493
    %529 = vmatprep.subr.mxu0 0.0
    %530 = vmatpush1.msra.mxu0 %v492
    %531 = vmatprep.subr.mxu0 0.0
    %532 = vmatpush1.msra.mxu0 %v491
    %533 = vmatprep.subr.mxu0 0.0
    %534 = vmatpush1.msra.mxu0 %v490
    %535 = vmatprep.subr.mxu0 0.0
    %536 = vmatpush1.msra.mxu0 %v489
    %537 = vmatprep.subr.mxu0 0.0
    %538 = vmatpush2.msra.mxu0 0.0
    %539 = vmatprep.subr.mxu0 0.0
    %540 = vmatpush2.msra.mxu0 0.0
    %541 = vmatprep.subr.mxu0 0.0
    %542 = vmatpush2.msra.mxu0 0.0
    %543 = vmatprep.subr.mxu0 0.0
    %544 = vmatpush2.msra.mxu0 0.0
    %545 = vmatprep.subr.mxu0 0.0
    %546 = vmatpush2.msra.mxu0 0.0
    %547 = vmatprep.subr.mxu0 0.0
    %548 = vmatpush2.msra.mxu0 0.0
    %549 = vmatprep.subr.mxu0 0.0
    %550 = vmatpush2.msra.mxu0 0.0
    %551 = vmatprep.subr.mxu0 0.0
    %552 = vmatpush2.msra.mxu0 0.0
    %553 = vmatprep.subr.mxu0 0.0
    %554 = vmatpush2.msra.mxu0 0.0
    %555 = vmatprep.subr.mxu0 0.0
    %556 = vmatpush2.msra.mxu0 0.0
    %557 = vmatprep.subr.mxu0 0.0
    %558 = vmatpush2.msra.mxu0 0.0
    %559 = vmatprep.subr.mxu0 0.0
    %560 = vmatpush2.msra.mxu0 0.0
    %561 = vmatprep.subr.mxu0 0.0
    %562 = vmatpush2.msra.mxu0 0.0
    %563 = vmatprep.subr.mxu0 0.0
    %564 = vmatpush2.msra.mxu0 0.0
    %565 = vmatprep.subr.mxu0 0.0
    %566 = vmatpush2.msra.mxu0 0.0
    %567 = vmatprep.subr.mxu0 0.0
    %568 = vmatpush2.msra.mxu0 0.0
    %569 = vmatprep.mubr.f32.mxu0 0.0
    %570 = vmatmul.mubr.f32.gmra.mxu0 %v481
    %v571 = vpop.f32.mrf.mxu0
    %v572 = vadd.f32 0.0, %v571
    %v573 = vpop.f32.mrf.mxu0
    %574 = vmatprep.mubr.f32.mxu0 0.0
    %575 = vmatmul.mubr.f32.gmra.mxu0 %v482
    %v576 = vpop.f32.mrf.mxu0
    %v577 = vadd.f32 0.0, %v576
    %v578 = vpop.f32.mrf.mxu0
    %579 = vmatprep.mubr.f32.mxu0 0.0
    %580 = vmatmul.mubr.f32.gmra.mxu0 %v483
    %v581 = vpop.f32.mrf.mxu0
    %v582 = vadd.f32 0.0, %v581
    %v583 = vpop.f32.mrf.mxu0
    %584 = vmatprep.mubr.f32.mxu0 0.0
    %585 = vmatmul.mubr.f32.gmra.mxu0 %v484
    %v586 = vpop.f32.mrf.mxu0
    %v587 = vadd.f32 0.0, %v586
    %v588 = vpop.f32.mrf.mxu0
    %589 = vmatprep.mubr.f32.mxu0 0.0
    %590 = vmatmul.mubr.f32.gmra.mxu0 %v485
    %v591 = vpop.f32.mrf.mxu0
    %v592 = vadd.f32 0.0, %v591
    %v593 = vpop.f32.mrf.mxu0
    %594 = vmatprep.mubr.f32.mxu0 0.0
    %595 = vmatmul.mubr.f32.gmra.mxu0 %v486
    %v596 = vpop.f32.mrf.mxu0
    %v597 = vadd.f32 0.0, %v596
    %v598 = vpop.f32.mrf.mxu0
    %599 = vmatprep.mubr.f32.mxu0 0.0
    %600 = vmatmul.mubr.f32.gmra.mxu0 %v487
    %v601 = vpop.f32.mrf.mxu0
    %v602 = vadd.f32 0.0, %v601
    %v603 = vpop.f32.mrf.mxu0
    %604 = vmatprep.mubr.f32.mxu0 0.0
    %605 = vmatmul.mubr.f32.gmra.mxu0 %v488
    %v606 = vpop.f32.mrf.mxu0
    %v607 = vadd.f32 0.0, %v606
    %v608 = vpop.f32.mrf.mxu0
    %609 = vdwg.mxu0
    %v610 = vld [vmem:[%s3] sm:$0xff]
    %v611 = vld [vmem:[%s3 + $0x8] sm:$0xff]
    %v612 = vld [vmem:[%s3 + $0x10] sm:$0xff]
    %v613 = vld [vmem:[%s3 + $0x18] sm:$0xff]
    %vm614 = vcmask 261120
    %v616 = vsel %vm614, %v572, 0
    %v619 = vsel %vm614, %v577, 0
    %v622 = vsel %vm614, %v582, 0
    %v625 = vsel %vm614, %v587, 0
    %v628 = vsel %vm614, %v592, 0
    %v631 = vsel %vm614, %v597, 0
    %v634 = vsel %vm614, %v602, 0
    %v637 = vsel %vm614, %v607, 0
    %639 = vmatprep.subr.mxu0 0.0
    %640 = vmatpush1.msra.mxu0 0.0
    %641 = vmatprep.subr.mxu0 0.0
    %642 = vmatpush1.msra.mxu0 0.0
    %643 = vmatprep.subr.mxu0 0.0
    %644 = vmatpush1.msra.mxu0 0.0
    %645 = vmatprep.subr.mxu0 0.0
    %646 = vmatpush1.msra.mxu0 0.0
    %647 = vmatprep.subr.mxu0 0.0
    %648 = vmatpush1.msra.mxu0 0.0
    %649 = vmatprep.subr.mxu0 0.0
    %650 = vmatpush1.msra.mxu0 0.0
    %651 = vmatprep.subr.mxu0 0.0
    %652 = vmatpush1.msra.mxu0 0.0
    %653 = vmatprep.subr.mxu0 0.0
    %654 = vmatpush1.msra.mxu0 0.0
    %655 = vmatprep.subr.mxu0 0.0
    %656 = vmatpush1.msra.mxu0 0.0
    %657 = vmatprep.subr.mxu0 0.0
    %658 = vmatpush1.msra.mxu0 0.0
    %659 = vmatprep.subr.mxu0 0.0
    %660 = vmatpush1.msra.mxu0 0.0
    %661 = vmatprep.subr.mxu0 0.0
    %662 = vmatpush1.msra.mxu0 0.0
    %663 = vmatprep.subr.mxu0 0.0
    %664 = vmatpush1.msra.mxu0 %v613
    %665 = vmatprep.subr.mxu0 0.0
    %666 = vmatpush1.msra.mxu0 %v612
    %667 = vmatprep.subr.mxu0 0.0
    %668 = vmatpush1.msra.mxu0 %v611
    %669 = vmatprep.subr.mxu0 0.0
    %670 = vmatpush1.msra.mxu0 %v610
    %671 = vmatprep.subr.mxu0 0.0
    %672 = vmatpush2.msra.mxu0 0.0
    %673 = vmatprep.subr.mxu0 0.0
    %674 = vmatpush2.msra.mxu0 0.0
    %675 = vmatprep.subr.mxu0 0.0
    %676 = vmatpush2.msra.mxu0 0.0
    %677 = vmatprep.subr.mxu0 0.0
    %678 = vmatpush2.msra.mxu0 0.0
    %679 = vmatprep.subr.mxu0 0.0
    %680 = vmatpush2.msra.mxu0 0.0
    %681 = vmatprep.subr.mxu0 0.0
    %682 = vmatpush2.msra.mxu0 0.0
    %683 = vmatprep.subr.mxu0 0.0
    %684 = vmatpush2.msra.mxu0 0.0
    %685 = vmatprep.subr.mxu0 0.0
    %686 = vmatpush2.msra.mxu0 0.0
    %687 = vmatprep.subr.mxu0 0.0
    %688 = vmatpush2.msra.mxu0 0.0
    %689 = vmatprep.subr.mxu0 0.0
    %690 = vmatpush2.msra.mxu0 0.0
    %691 = vmatprep.subr.mxu0 0.0
    %692 = vmatpush2.msra.mxu0 0.0
    %693 = vmatprep.subr.mxu0 0.0
    %694 = vmatpush2.msra.mxu0 0.0
    %695 = vmatprep.subr.mxu0 0.0
    %696 = vmatpush2.msra.mxu0 0.0
    %697 = vmatprep.subr.mxu0 0.0
    %698 = vmatpush2.msra.mxu0 0.0
    %699 = vmatprep.subr.mxu0 0.0
    %700 = vmatpush2.msra.mxu0 0.0
    %701 = vmatprep.subr.mxu0 0.0
    %702 = vmatpush2.msra.mxu0 0.0
    %703 = vmatprep.mubr.f32.mxu0 0.0
    %704 = vmatmul.mubr.f32.gmra.mxu0 %v616
    %v705 = vpop.f32.mrf.mxu0
    %v706 = vadd.f32 0.0, %v705
    %v707 = vpop.f32.mrf.mxu0
    %708 = vmatprep.mubr.f32.mxu0 0.0
    %709 = vmatmul.mubr.f32.gmra.mxu0 %v619
    %v710 = vpop.f32.mrf.mxu0
    %v711 = vadd.f32 0.0, %v710
    %v712 = vpop.f32.mrf.mxu0
    %713 = vmatprep.mubr.f32.mxu0 0.0
    %714 = vmatmul.mubr.f32.gmra.mxu0 %v622
    %v715 = vpop.f32.mrf.mxu0
    %v716 = vadd.f32 0.0, %v715
    %v717 = vpop.f32.mrf.mxu0
    %718 = vmatprep.mubr.f32.mxu0 0.0
    %719 = vmatmul.mubr.f32.gmra.mxu0 %v625
    %v720 = vpop.f32.mrf.mxu0
    %v721 = vadd.f32 0.0, %v720
    %v722 = vpop.f32.mrf.mxu0
    %723 = vmatprep.mubr.f32.mxu0 0.0
    %724 = vmatmul.mubr.f32.gmra.mxu0 %v628
    %v725 = vpop.f32.mrf.mxu0
    %v726 = vadd.f32 0.0, %v725
    %v727 = vpop.f32.mrf.mxu0
    %728 = vmatprep.mubr.f32.mxu0 0.0
    %729 = vmatmul.mubr.f32.gmra.mxu0 %v631
    %v730 = vpop.f32.mrf.mxu0
    %v731 = vadd.f32 0.0, %v730
    %v732 = vpop.f32.mrf.mxu0
    %733 = vmatprep.mubr.f32.mxu0 0.0
    %734 = vmatmul.mubr.f32.gmra.mxu0 %v634
    %v735 = vpop.f32.mrf.mxu0
    %v736 = vadd.f32 0.0, %v735
    %v737 = vpop.f32.mrf.mxu0
    %738 = vmatprep.mubr.f32.mxu0 0.0
    %739 = vmatmul.mubr.f32.gmra.mxu0 %v637
    %v740 = vpop.f32.mrf.mxu0
    %v741 = vadd.f32 0.0, %v740
    %v742 = vpop.f32.mrf.mxu0
    %743 = vdwg.mxu0
    %744 = vst [vmem:[#allocation4] sm:$0xff] %v706
    %745 = vst [vmem:[#allocation4 + $0x8] sm:$0xff] %v711
    %746 = vst [vmem:[#allocation4 + $0x10] sm:$0xff] %v716
    %747 = vst [vmem:[#allocation4 + $0x18] sm:$0xff] %v721
    %748 = vst [vmem:[#allocation4 + $0x20] sm:$0xff] %v726
    %749 = vst [vmem:[#allocation4 + $0x28] sm:$0xff] %v731
    %750 = vst [vmem:[#allocation4 + $0x30] sm:$0xff] %v736
    %751 = vst [vmem:[#allocation4 + $0x38] sm:$0xff] %v741
    // Predicated region
    $region18: #{tpu_custom_call.1} parent=1 // pred_check
      _
    $region19: #{tpu_custom_call.1} parent=1 // pred_check_branch
      %753 = sbr.rel (0) target = $region21
    $region20: #{tpu_custom_call.1} parent=1 // pred_region
      %s755 = ssub.s32 1024, 1024
      %756 = vsyncadd [#allocation3], %s755
      %s757 = sshll.u32 [#allocation2], 4
      %s758 = int_to_ptr.vmem [resolvable:$true] %s757
      %763 = dma.vmem_to_hbm [thread:$0]  %s758, 1024, %s4, [#allocation3], 128, 128, 8
    $region21: #{tpu_custom_call.1} parent=1 // pred_fallthru
      _
    // Predicated region
    $region22: #{tpu_custom_call.1} parent=1 // pred_check
      _
    $region23: #{tpu_custom_call.1} parent=1 // pred_check_branch
      %765 = sbr.rel (0) target = $region25
    $region24: #{tpu_custom_call.1} parent=1 // pred_region
      %s767 = ssub.s32 1024, 1024
      %768 = vsyncadd [#allocation5], %s767
      %s769 = sshll.u32 [#allocation4], 4
      %s770 = int_to_ptr.vmem [resolvable:$true] %s769
      %775 = dma.vmem_to_hbm [thread:$0]  %s770, 1024, %s5, [#allocation5], 128, 128, 8
    $region25: #{tpu_custom_call.1} parent=1 // pred_fallthru
      _
    // Predicated region
    $region26: #{tpu_custom_call.1} parent=1 // pred_check
      _
    $region27: #{tpu_custom_call.1} parent=1 // pred_check_branch
      %777 = sbr.rel (0) target = $region29
    $region28: #{tpu_custom_call.1} parent=1 // pred_region
      %778 = dma.done [#allocation3], 1024
    $region29: #{tpu_custom_call.1} parent=1 // pred_fallthru
      _
    // Predicated region
    $region30: #{tpu_custom_call.1} parent=1 // pred_check
      _
    $region31: #{tpu_custom_call.1} parent=1 // pred_check_branch
      %780 = sbr.rel (0) target = $region33
    $region32: #{tpu_custom_call.1} parent=1 // pred_region
      %781 = dma.done [#allocation5], 1024
    $region33: #{tpu_custom_call.1} parent=1 // pred_fallthru
      _
    %782 = vsyncpa [#allocation3], 1
    %783 = vsyncpa [#allocation5], 1

</llo_original>
